<compile_context>
chip_gen: v7x
topology: tpu7x:2x2x1
jax: 0.10.0
libtpu: 0.0.40
codegen_flags: <defaults>
</compile_context>

<pallas_src>
import functools
import math

import jax
import jax.numpy as jnp
from jax.experimental import pallas as pl
from jax.experimental.pallas import tpu as pltpu

LANE = 128      # lane width (last dim)
SUBLANE = 8     # f32 sublane count (second-to-last dim)


def _round_up(n, m):
    return ((n + m - 1) // m) * m


# ----------------------------------------------------------------------------
# Fused kernel: trunk -> merged mu/logvar head -> reparam -> decoder
# ----------------------------------------------------------------------------
def _make_fused_kernel(n_trunk, n_dec, lat_pad):
    """Builds the kernel body for a given layer count (traced once)."""

    def kernel(*refs):
        it = iter(refs)

        # ---- shared encoder trunk: Linear + ReLU per layer ----
        h = next(it)[...]                                   # x  (Bp, in_pad)
        for _ in range(n_trunk):
            w = next(it)[...]
            b = next(it)[...]
            h = jnp.maximum(
                jnp.dot(h, w, preferred_element_type=jnp.float32) + b, 0.0)

        # ---- merged mu/logvar head: one matmul, lanes [0:lat_pad]=mu,
        #      [lat_pad:2*lat_pad]=logvar (128-aligned split) ----
        w_head = next(it)[...]
        b_head = next(it)[...]
        eps = next(it)[...]
        head = jnp.dot(h, w_head, preferred_element_type=jnp.float32) + b_head
        mu = head[:, :lat_pad]
        logvar = head[:, lat_pad:]

        # ---- reparameterization (exp on EUP, all f32) ----
        z = mu + eps * jnp.exp(logvar * 0.5)

        # ---- decoder: Linear (+ ReLU except after the last layer) ----
        h = z
        for j in range(n_dec):
            w = next(it)[...]
            b = next(it)[...]
            h = jnp.dot(h, w, preferred_element_type=jnp.float32) + b
            if j != n_dec - 1:
                h = jnp.maximum(h, 0.0)

        recon_ref = next(it)
        mu_ref = next(it)
        logvar_ref = next(it)
        recon_ref[...] = h.astype(recon_ref.dtype)
        mu_ref[...] = mu.astype(mu_ref.dtype)
        logvar_ref[...] = logvar.astype(logvar_ref.dtype)

    return kernel


def _fused_forward(x_p, eps_p, trunk, head, decoder):
    """Single pallas_call over lane-padded operands. All blocks = full arrays."""
    bp = x_p.shape[0]
    lat_pad = eps_p.shape[1]
    out_pad = decoder[-1][0].shape[1]

    inputs = [x_p]
    for w, b in trunk:
        inputs += [w, b]
    inputs += [head[0], head[1], eps_p]
    for w, b in decoder:
        inputs += [w, b]

    out_shape = (
        jax.ShapeDtypeStruct((bp, out_pad), jnp.float32),   # recon
        jax.ShapeDtypeStruct((bp, lat_pad), jnp.float32),   # mu
        jax.ShapeDtypeStruct((bp, lat_pad), jnp.float32),   # logvar
    )

    kernel = _make_fused_kernel(len(trunk), len(decoder), lat_pad)
    # No grid: whole (padded) problem fits in VMEM in one shot.
    # TODO(synk): for large batches, add a "parallel" grid over the batch axis
    # (multiples of 8 rows) to shard across v7x's 2 TensorCores.
    return pl.pallas_call(
        kernel,
        out_shape=out_shape,
        in_specs=[pl.BlockSpec(a.shape, lambda: (0, 0)) for a in inputs],
        out_specs=tuple(pl.BlockSpec(s.shape, lambda: (0, 0)) for s in out_shape),
        compiler_params=pltpu.CompilerParams(vmem_limit_bytes=32 * 1024 * 1024),
    )(*inputs)


# ----------------------------------------------------------------------------
# JIT-ed wrapper (pads inputs to lane/sublane multiples, slices outputs back)
# ----------------------------------------------------------------------------
@functools.partial(jax.jit, static_argnames=("output_dim",))
def autoencoder_forward(params, x, eps, *, output_dim):
    B, in_dim = x.shape
    latent_dim = eps.shape[1]
    trunk, head, decoder = params["trunk"], params["head"], params["decoder"]

    in_pad = trunk[0][0].shape[0]
    lat_pad = head[0].shape[1] // 2
    bp = _round_up(B, SUBLANE)

    x_p = jnp.pad(x, ((0, bp - B), (0, in_pad - in_dim)))
    eps_p = jnp.pad(eps, ((0, bp - B), (0, lat_pad - latent_dim)))

    recon_p, mu_p, logvar_p = _fused_forward(x_p, eps_p, trunk, head, decoder)
    return (recon_p[:B, :output_dim],
            mu_p[:B, :latent_dim],
            logvar_p[:B, :latent_dim])


# ----------------------------------------------------------------------------
# Parameter construction (mimics nn.Linear default init, zero-padded to lanes)
# ----------------------------------------------------------------------------
def init_linear(key, in_dim, out_dim, in_pad, out_pad):
    kw, kb = jax.random.split(key)
    bound = 1.0 / math.sqrt(in_dim)
    w = jax.random.uniform(kw, (in_dim, out_dim), jnp.float32, -bound, bound)
    b = jax.random.uniform(kb, (out_dim,), jnp.float32, -bound, bound)
    w_p = jnp.zeros((in_pad, out_pad), jnp.float32).at[:in_dim, :out_dim].set(w)
    b_p = jnp.zeros((1, out_pad), jnp.float32).at[0, :out_dim].set(b)
    return w_p, b_p


def build_params(key, input_dim, hidden_layers, latent_dim, output_dim):
    in_pad = _round_up(input_dim, LANE)
    hid_pad = [_round_up(h, LANE) for h in hidden_layers]
    lat_pad = _round_up(latent_dim, LANE)
    out_pad = _round_up(output_dim, LANE)

    n_trunk = len(hidden_layers)
    n_dec = len(hidden_layers) + 1
    keys = jax.random.split(key, n_trunk + 2 + n_dec)
    ki = iter(keys)

    # Shared encoder trunk: input -> hidden[0] -> ... -> hidden[-1]
    trunk = []
    dims = [input_dim] + list(hidden_layers)
    pdims = [in_pad] + hid_pad
    for i in range(n_trunk):
        trunk.append(init_linear(next(ki), dims[i], dims[i + 1],
                                 pdims[i], pdims[i + 1]))

    # Merged mu / logvar head: (hid_pad[-1], 2*lat_pad)
    w_mu, b_mu = init_linear(next(ki), hidden_layers[-1], latent_dim,
                             hid_pad[-1], lat_pad)
    w_lv, b_lv = init_linear(next(ki), hidden_layers[-1], latent_dim,
                             hid_pad[-1], lat_pad)
    head = (jnp.concatenate([w_mu, w_lv], axis=1),
            jnp.concatenate([b_mu, b_lv], axis=1))

    # Decoder: latent -> reversed(hidden) -> output_dim
    dec = []
    ddims = [latent_dim] + list(hidden_layers[::-1]) + [output_dim]
    pddims = [lat_pad] + hid_pad[::-1] + [out_pad]
    for i in range(n_dec):
        dec.append(init_linear(next(ki), ddims[i], ddims[i + 1],
                               pddims[i], pddims[i + 1]))

    return {"trunk": trunk, "head": head, "decoder": dec}


# ----------------------------------------------------------------------------
if __name__ == "__main__":
    # Small shapes consistent with the module's constructor:
    #   io_dims = (input_dim, latent_dim, output_dim), hidden_layers list.
    batch = 8
    input_dim = 16
    latent_dim = 8
    output_dim = 16
    hidden_layers = [32, 16]
    # r_kld / Adam optimizer only affect training, not forward().

    root = jax.random.PRNGKey(0)
    k_params, k_x, k_eps = jax.random.split(root, 3)

    params = build_params(k_params, input_dim, hidden_layers, latent_dim, output_dim)
    x = jax.random.normal(k_x, (batch, input_dim), jnp.float32)
    eps = jax.random.normal(k_eps, (batch, latent_dim), jnp.float32)  # randn_like(std)

    recon_x, mu, logvar = autoencoder_forward(params, x, eps, output_dim=output_dim)
    jax.block_until_ready((recon_x, mu, logvar))

    assert recon_x.shape == (batch, output_dim)
    assert mu.shape == (batch, latent_dim)
    assert logvar.shape == (batch, latent_dim)
    assert bool(jnp.all(jnp.isfinite(recon_x)))
    assert bool(jnp.all(jnp.isfinite(mu)))
    assert bool(jnp.all(jnp.isfinite(logvar)))
    print("KERNEL_OK")
</pallas_src>

<mosaic_0001>
module attributes {stable_mosaic.version = 11 : i64} {
  func.func @kernel(%arg0: memref<8x128xf32, #tpu.memory_space<vmem>>, %arg1: memref<128x128xf32, #tpu.memory_space<vmem>>, %arg2: memref<1x128xf32, #tpu.memory_space<vmem>>, %arg3: memref<128x128xf32, #tpu.memory_space<vmem>>, %arg4: memref<1x128xf32, #tpu.memory_space<vmem>>, %arg5: memref<128x256xf32, #tpu.memory_space<vmem>>, %arg6: memref<1x256xf32, #tpu.memory_space<vmem>>, %arg7: memref<8x128xf32, #tpu.memory_space<vmem>>, %arg8: memref<128x128xf32, #tpu.memory_space<vmem>>, %arg9: memref<1x128xf32, #tpu.memory_space<vmem>>, %arg10: memref<128x128xf32, #tpu.memory_space<vmem>>, %arg11: memref<1x128xf32, #tpu.memory_space<vmem>>, %arg12: memref<128x128xf32, #tpu.memory_space<vmem>>, %arg13: memref<1x128xf32, #tpu.memory_space<vmem>>, %arg14: memref<8x128xf32, #tpu.memory_space<vmem>>, %arg15: memref<8x128xf32, #tpu.memory_space<vmem>>, %arg16: memref<8x128xf32, #tpu.memory_space<vmem>>) attributes {dimension_semantics = [], scalar_prefetch = 0 : i64, scratch_operands = 0 : i64, tpu.core_type = #tpu.core_type<tc>} {
    %c0 = arith.constant 0 : index
    %c0_0 = arith.constant 0 : index
    %0 = vector.load %arg0[%c0, %c0_0] : memref<8x128xf32, #tpu.memory_space<vmem>>, vector<8x128xf32>
    %c0_1 = arith.constant 0 : index
    %c0_2 = arith.constant 0 : index
    %1 = vector.load %arg1[%c0_1, %c0_2] : memref<128x128xf32, #tpu.memory_space<vmem>>, vector<128x128xf32>
    %c0_3 = arith.constant 0 : index
    %c0_4 = arith.constant 0 : index
    %2 = vector.load %arg2[%c0_3, %c0_4] : memref<1x128xf32, #tpu.memory_space<vmem>>, vector<1x128xf32>
    %cst = arith.constant dense<0.000000e+00> : vector<8x128xf32>
    %3 = tpu.matmul %0, %1, %cst {dimension_numbers = #tpu.dot_dimension_numbers<[1], [0], [0], [1], [0, 0, 1, 1], [], []>} : vector<8x128xf32>, vector<128x128xf32>, vector<8x128xf32> -> vector<8x128xf32>
    %4 = vector.broadcast %2 : vector<1x128xf32> to vector<8x128xf32>
    %5 = arith.addf %3, %4 : vector<8x128xf32>
    %cst_5 = arith.constant 0.000000e+00 : f32
    %6 = vector.broadcast %cst_5 : f32 to vector<8x128xf32>
    %7 = arith.maximumf %5, %6 : vector<8x128xf32>
    %c0_6 = arith.constant 0 : index
    %c0_7 = arith.constant 0 : index
    %8 = vector.load %arg3[%c0_6, %c0_7] : memref<128x128xf32, #tpu.memory_space<vmem>>, vector<128x128xf32>
    %c0_8 = arith.constant 0 : index
    %c0_9 = arith.constant 0 : index
    %9 = vector.load %arg4[%c0_8, %c0_9] : memref<1x128xf32, #tpu.memory_space<vmem>>, vector<1x128xf32>
    %cst_10 = arith.constant dense<0.000000e+00> : vector<8x128xf32>
    %10 = tpu.matmul %7, %8, %cst_10 {dimension_numbers = #tpu.dot_dimension_numbers<[1], [0], [0], [1], [0, 0, 1, 1], [], []>} : vector<8x128xf32>, vector<128x128xf32>, vector<8x128xf32> -> vector<8x128xf32>
    %11 = vector.broadcast %9 : vector<1x128xf32> to vector<8x128xf32>
    %12 = arith.addf %10, %11 : vector<8x128xf32>
    %cst_11 = arith.constant 0.000000e+00 : f32
    %13 = vector.broadcast %cst_11 : f32 to vector<8x128xf32>
    %14 = arith.maximumf %12, %13 : vector<8x128xf32>
    %c0_12 = arith.constant 0 : index
    %c0_13 = arith.constant 0 : index
    %15 = vector.load %arg5[%c0_12, %c0_13] : memref<128x256xf32, #tpu.memory_space<vmem>>, vector<128x256xf32>
    %c0_14 = arith.constant 0 : index
    %c0_15 = arith.constant 0 : index
    %16 = vector.load %arg6[%c0_14, %c0_15] : memref<1x256xf32, #tpu.memory_space<vmem>>, vector<1x256xf32>
    %c0_16 = arith.constant 0 : index
    %c0_17 = arith.constant 0 : index
    %17 = vector.load %arg7[%c0_16, %c0_17] : memref<8x128xf32, #tpu.memory_space<vmem>>, vector<8x128xf32>
    %cst_18 = arith.constant dense<0.000000e+00> : vector<8x256xf32>
    %18 = tpu.matmul %14, %15, %cst_18 {dimension_numbers = #tpu.dot_dimension_numbers<[1], [0], [0], [1], [0, 0, 1, 1], [], []>} : vector<8x128xf32>, vector<128x256xf32>, vector<8x256xf32> -> vector<8x256xf32>
    %19 = vector.broadcast %16 : vector<1x256xf32> to vector<8x256xf32>
    %20 = arith.addf %18, %19 : vector<8x256xf32>
    %21 = vector.extract_strided_slice %20 {offsets = [0, 0], sizes = [8, 128], strides = [1, 1]} : vector<8x256xf32> to vector<8x128xf32>
    %22 = vector.extract_strided_slice %20 {offsets = [0, 128], sizes = [8, 128], strides = [1, 1]} : vector<8x256xf32> to vector<8x128xf32>
    %cst_19 = arith.constant 5.000000e-01 : f32
    %23 = vector.broadcast %cst_19 : f32 to vector<8x128xf32>
    %24 = arith.mulf %22, %23 : vector<8x128xf32>
    %25 = math.exp %24 : vector<8x128xf32>
    %26 = arith.mulf %17, %25 : vector<8x128xf32>
    %27 = arith.addf %21, %26 : vector<8x128xf32>
    %c0_20 = arith.constant 0 : index
    %c0_21 = arith.constant 0 : index
    %28 = vector.load %arg8[%c0_20, %c0_21] : memref<128x128xf32, #tpu.memory_space<vmem>>, vector<128x128xf32>
    %c0_22 = arith.constant 0 : index
    %c0_23 = arith.constant 0 : index
    %29 = vector.load %arg9[%c0_22, %c0_23] : memref<1x128xf32, #tpu.memory_space<vmem>>, vector<1x128xf32>
    %cst_24 = arith.constant dense<0.000000e+00> : vector<8x128xf32>
    %30 = tpu.matmul %27, %28, %cst_24 {dimension_numbers = #tpu.dot_dimension_numbers<[1], [0], [0], [1], [0, 0, 1, 1], [], []>} : vector<8x128xf32>, vector<128x128xf32>, vector<8x128xf32> -> vector<8x128xf32>
    %31 = vector.broadcast %29 : vector<1x128xf32> to vector<8x128xf32>
    %32 = arith.addf %30, %31 : vector<8x128xf32>
    %cst_25 = arith.constant 0.000000e+00 : f32
    %33 = vector.broadcast %cst_25 : f32 to vector<8x128xf32>
    %34 = arith.maximumf %32, %33 : vector<8x128xf32>
    %c0_26 = arith.constant 0 : index
    %c0_27 = arith.constant 0 : index
    %35 = vector.load %arg10[%c0_26, %c0_27] : memref<128x128xf32, #tpu.memory_space<vmem>>, vector<128x128xf32>
    %c0_28 = arith.constant 0 : index
    %c0_29 = arith.constant 0 : index
    %36 = vector.load %arg11[%c0_28, %c0_29] : memref<1x128xf32, #tpu.memory_space<vmem>>, vector<1x128xf32>
    %cst_30 = arith.constant dense<0.000000e+00> : vector<8x128xf32>
    %37 = tpu.matmul %34, %35, %cst_30 {dimension_numbers = #tpu.dot_dimension_numbers<[1], [0], [0], [1], [0, 0, 1, 1], [], []>} : vector<8x128xf32>, vector<128x128xf32>, vector<8x128xf32> -> vector<8x128xf32>
    %38 = vector.broadcast %36 : vector<1x128xf32> to vector<8x128xf32>
    %39 = arith.addf %37, %38 : vector<8x128xf32>
    %cst_31 = arith.constant 0.000000e+00 : f32
    %40 = vector.broadcast %cst_31 : f32 to vector<8x128xf32>
    %41 = arith.maximumf %39, %40 : vector<8x128xf32>
    %c0_32 = arith.constant 0 : index
    %c0_33 = arith.constant 0 : index
    %42 = vector.load %arg12[%c0_32, %c0_33] : memref<128x128xf32, #tpu.memory_space<vmem>>, vector<128x128xf32>
    %c0_34 = arith.constant 0 : index
    %c0_35 = arith.constant 0 : index
    %43 = vector.load %arg13[%c0_34, %c0_35] : memref<1x128xf32, #tpu.memory_space<vmem>>, vector<1x128xf32>
    %cst_36 = arith.constant dense<0.000000e+00> : vector<8x128xf32>
    %44 = tpu.matmul %41, %42, %cst_36 {dimension_numbers = #tpu.dot_dimension_numbers<[1], [0], [0], [1], [0, 0, 1, 1], [], []>} : vector<8x128xf32>, vector<128x128xf32>, vector<8x128xf32> -> vector<8x128xf32>
    %45 = vector.broadcast %43 : vector<1x128xf32> to vector<8x128xf32>
    %46 = arith.addf %44, %45 : vector<8x128xf32>
    %c0_37 = arith.constant 0 : index
    %c0_38 = arith.constant 0 : index
    %47 = vector.load %arg14[%c0_37, %c0_38] : memref<8x128xf32, #tpu.memory_space<vmem>>, vector<8x128xf32>
    tpu.vector_store %arg14[%c0_37, %c0_38], %46 {strides = array<i32>} : memref<8x128xf32, #tpu.memory_space<vmem>>, vector<8x128xf32>,
    %c0_39 = arith.constant 0 : index
    %c0_40 = arith.constant 0 : index
    %48 = vector.load %arg15[%c0_39, %c0_40] : memref<8x128xf32, #tpu.memory_space<vmem>>, vector<8x128xf32>
    tpu.vector_store %arg15[%c0_39, %c0_40], %21 {strides = array<i32>} : memref<8x128xf32, #tpu.memory_space<vmem>>, vector<8x128xf32>,
    %c0_41 = arith.constant 0 : index
    %c0_42 = arith.constant 0 : index
    %49 = vector.load %arg16[%c0_41, %c0_42] : memref<8x128xf32, #tpu.memory_space<vmem>>, vector<8x128xf32>
    tpu.vector_store %arg16[%c0_41, %c0_42], %22 {strides = array<i32>} : memref<8x128xf32, #tpu.memory_space<vmem>>, vector<8x128xf32>,
    return
  }
}

</mosaic_0001>

<llo_original>
// kernel: autoencoder_forward.1
$region0: #{autoencoder_forward.1}
  #allocation0 [shape = 'u32[]', space=smem, size = 0x4, offset = 0x4, fixed_abs, tag = 'smem constant byte address 0x4 - core index']
  #allocation1 [shape = 'u32[144,128]{1,0:T(1,128)}', space=vmem, size = 0x12000, scoped, tag = 'internal scratch']
  %s0 = inlined_call_operand.vmem [shape: f32[8,128], index: 0, kind: input, shape index: {}]
  %s1 = inlined_call_operand.hbm [shape: f32[128,128], index: 1, kind: input, shape index: {}]
  %s2 = inlined_call_operand.vmem [shape: f32[1,128], index: 2, kind: input, shape index: {}]
  %s3 = inlined_call_operand.hbm [shape: f32[128,128], index: 3, kind: input, shape index: {}]
  %s4 = inlined_call_operand.vmem [shape: f32[1,128], index: 4, kind: input, shape index: {}]
  %s5 = inlined_call_operand.hbm [shape: f32[128,256], index: 5, kind: input, shape index: {}]
  %s6 = inlined_call_operand.vmem [shape: f32[1,256], index: 6, kind: input, shape index: {}]
  %s7 = inlined_call_operand.vmem [shape: f32[8,128], index: 7, kind: input, shape index: {}]
  %s8 = inlined_call_operand.hbm [shape: f32[128,128], index: 8, kind: input, shape index: {}]
  %s9 = inlined_call_operand.vmem [shape: f32[1,128], index: 9, kind: input, shape index: {}]
  %s10 = inlined_call_operand.hbm [shape: f32[128,128], index: 10, kind: input, shape index: {}]
  %s11 = inlined_call_operand.vmem [shape: f32[1,128], index: 11, kind: input, shape index: {}]
  %s12 = inlined_call_operand.hbm [shape: f32[128,128], index: 12, kind: input, shape index: {}]
  %s13 = inlined_call_operand.vmem [shape: f32[1,128], index: 13, kind: input, shape index: {}]
  %s14 = inlined_call_operand.hbm [shape: f32[8,128], index: 14, kind: output, shape index: {0}]
  %s15 = inlined_call_operand.hbm [shape: f32[8,128], index: 15, kind: output, shape index: {1}]
  %s16 = inlined_call_operand.hbm [shape: f32[8,128], index: 16, kind: output, shape index: {2}]
  %17 = xla_tuple %s14, %s15, %s16
  %s18 = sld [smem:[#allocation0]]
  $region106: #{autoencoder_forward.1} parent=0
    _
  %s20 = ssub.s32 1, %s18
  %s21 = scalar_select 0, %s20, %s18
  $region1: #{autoencoder_forward.1} parent=0
    #allocation2 [shape = 'u8[65536]{0}', space=vmem, size = 0x10000, scoped, tag = 'input window, operand 1, single buffered']
    #allocation3 [shape = 's32[1]{0}', space=sflag, size = 0x4, scoped, tag = 'scoped memory for autoencoder_forward.1']
    #allocation4 [shape = 's32[1]{0}', space=sflag, size = 0x4, scoped, tag = 'scoped memory for autoencoder_forward.1']
    #allocation5 [shape = 'u8[65536]{0}', space=vmem, size = 0x10000, scoped, tag = 'input window, operand 3, single buffered']
    #allocation6 [shape = 's32[1]{0}', space=sflag, size = 0x4, scoped, tag = 'scoped memory for autoencoder_forward.1']
    #allocation7 [shape = 'u8[131072]{0}', space=vmem, size = 0x20000, scoped, tag = 'input window, operand 5, single buffered']
    #allocation8 [shape = 'u8[65536]{0}', space=vmem, size = 0x10000, scoped, tag = 'input window, operand 8, single buffered']
    #allocation9 [shape = 's32[1]{0}', space=sflag, size = 0x4, scoped, tag = 'scoped memory for autoencoder_forward.1']
    #allocation10 [shape = 'u8[65536]{0}', space=vmem, size = 0x10000, scoped, tag = 'input window, operand 10, single buffered']
    #allocation11 [shape = 'u8[65536]{0}', space=vmem, size = 0x10000, scoped, tag = 'input window, operand 12, single buffered']
    #allocation12 [shape = 's32[1]{0}', space=sflag, size = 0x4, scoped, tag = 'scoped memory for autoencoder_forward.1']
    #allocation13 [shape = 'u8[4096]{0}', space=vmem, size = 0x1000, scoped, tag = 'output window, operand 0, single buffered']
    #allocation14 [shape = 'u8[4096]{0}', space=vmem, size = 0x1000, scoped, tag = 'output window, operand 1, single buffered']
    #allocation15 [shape = 's32[1]{0}', space=sflag, size = 0x4, scoped, tag = 'scoped memory for autoencoder_forward.1']
    #allocation16 [shape = 'u8[4096]{0}', space=vmem, size = 0x1000, scoped, tag = 'output window, operand 2, single buffered']
    %22 = vsyncpa [#allocation3], 0
    %23 = vsyncpa [#allocation6], 0
    %24 = vsyncpa [#allocation9], 0
    %25 = vsyncpa [#allocation12], 0
    %26 = vsyncpa [#allocation4], 0
    %27 = vsyncpa [#allocation15], 0
    // Predicated region
    $region2: #{autoencoder_forward.1} parent=1 // pred_check
      _
    $region3: #{autoencoder_forward.1} parent=1 // pred_check_branch
      %29 = sbr.rel (0) target = $region5
    $region4: #{autoencoder_forward.1} parent=1 // pred_region
      _
    $region5: #{autoencoder_forward.1} parent=1 // pred_fallthru
      _
    // Predicated region
    $region6: #{autoencoder_forward.1} parent=1 // pred_check
      _
    $region7: #{autoencoder_forward.1} parent=1 // pred_check_branch
      %31 = sbr.rel (0) target = $region9
    $region8: #{autoencoder_forward.1} parent=1 // pred_region
      %s33 = ssub.s32 2048, 2048
      %34 = vsyncadd [#allocation3], %s33
      %s35 = sshll.u32 [#allocation2], 4
      %s36 = int_to_ptr.vmem [resolvable:$true] %s35
      %41 = dma.hbm_to_vmem [thread:$0]  %s1, 2048, %s36, [#allocation3], 128, 128, 8
    $region9: #{autoencoder_forward.1} parent=1 // pred_fallthru
      _
    // Predicated region
    $region10: #{autoencoder_forward.1} parent=1 // pred_check
      _
    $region11: #{autoencoder_forward.1} parent=1 // pred_check_branch
      %43 = sbr.rel (0) target = $region13
    $region12: #{autoencoder_forward.1} parent=1 // pred_region
      _
    $region13: #{autoencoder_forward.1} parent=1 // pred_fallthru
      _
    // Predicated region
    $region14: #{autoencoder_forward.1} parent=1 // pred_check
      _
    $region15: #{autoencoder_forward.1} parent=1 // pred_check_branch
      %45 = sbr.rel (0) target = $region17
    $region16: #{autoencoder_forward.1} parent=1 // pred_region
      %s47 = ssub.s32 2048, 2048
      %48 = vsyncadd [#allocation6], %s47
      %s49 = sshll.u32 [#allocation5], 4
      %s50 = int_to_ptr.vmem [resolvable:$true] %s49
      %55 = dma.hbm_to_vmem [thread:$0]  %s3, 2048, %s50, [#allocation6], 128, 128, 8
    $region17: #{autoencoder_forward.1} parent=1 // pred_fallthru
      _
    // Predicated region
    $region18: #{autoencoder_forward.1} parent=1 // pred_check
      _
    $region19: #{autoencoder_forward.1} parent=1 // pred_check_branch
      %57 = sbr.rel (0) target = $region21
    $region20: #{autoencoder_forward.1} parent=1 // pred_region
      _
    $region21: #{autoencoder_forward.1} parent=1 // pred_fallthru
      _
    // Predicated region
    $region22: #{autoencoder_forward.1} parent=1 // pred_check
      _
    $region23: #{autoencoder_forward.1} parent=1 // pred_check_branch
      %59 = sbr.rel (0) target = $region25
    $region24: #{autoencoder_forward.1} parent=1 // pred_region
      %s61 = ssub.s32 4096, 4096
      %62 = vsyncadd [#allocation6], %s61
      %s63 = sshll.u32 [#allocation7], 4
      %s64 = int_to_ptr.vmem [resolvable:$true] %s63
      %69 = dma.hbm_to_vmem [thread:$0]  %s5, 4096, %s64, [#allocation6], 256, 256, 16
    $region25: #{autoencoder_forward.1} parent=1 // pred_fallthru
      _
    // Predicated region
    $region26: #{autoencoder_forward.1} parent=1 // pred_check
      _
    $region27: #{autoencoder_forward.1} parent=1 // pred_check_branch
      %71 = sbr.rel (0) target = $region29
    $region28: #{autoencoder_forward.1} parent=1 // pred_region
      _
    $region29: #{autoencoder_forward.1} parent=1 // pred_fallthru
      _
    // Predicated region
    $region30: #{autoencoder_forward.1} parent=1 // pred_check
      _
    $region31: #{autoencoder_forward.1} parent=1 // pred_check_branch
      %73 = sbr.rel (0) target = $region33
    $region32: #{autoencoder_forward.1} parent=1 // pred_region
      _
    $region33: #{autoencoder_forward.1} parent=1 // pred_fallthru
      _
    // Predicated region
    $region34: #{autoencoder_forward.1} parent=1 // pred_check
      _
    $region35: #{autoencoder_forward.1} parent=1 // pred_check_branch
      %75 = sbr.rel (0) target = $region37
    $region36: #{autoencoder_forward.1} parent=1 // pred_region
      %s77 = ssub.s32 2048, 2048
      %78 = vsyncadd [#allocation9], %s77
      %s79 = sshll.u32 [#allocation8], 4
      %s80 = int_to_ptr.vmem [resolvable:$true] %s79
      %85 = dma.hbm_to_vmem [thread:$0]  %s8, 2048, %s80, [#allocation9], 128, 128, 8
    $region37: #{autoencoder_forward.1} parent=1 // pred_fallthru
      _
    // Predicated region
    $region38: #{autoencoder_forward.1} parent=1 // pred_check
      _
    $region39: #{autoencoder_forward.1} parent=1 // pred_check_branch
      %87 = sbr.rel (0) target = $region41
    $region40: #{autoencoder_forward.1} parent=1 // pred_region
      _
    $region41: #{autoencoder_forward.1} parent=1 // pred_fallthru
      _
    // Predicated region
    $region42: #{autoencoder_forward.1} parent=1 // pred_check
      _
    $region43: #{autoencoder_forward.1} parent=1 // pred_check_branch
      %89 = sbr.rel (0) target = $region45
    $region44: #{autoencoder_forward.1} parent=1 // pred_region
      %s91 = ssub.s32 2048, 2048
      %92 = vsyncadd [#allocation9], %s91
      %s93 = sshll.u32 [#allocation10], 4
      %s94 = int_to_ptr.vmem [resolvable:$true] %s93
      %99 = dma.hbm_to_vmem [thread:$0]  %s10, 2048, %s94, [#allocation9], 128, 128, 8
    $region45: #{autoencoder_forward.1} parent=1 // pred_fallthru
      _
    // Predicated region
    $region46: #{autoencoder_forward.1} parent=1 // pred_check
      _
    $region47: #{autoencoder_forward.1} parent=1 // pred_check_branch
      %101 = sbr.rel (0) target = $region49
    $region48: #{autoencoder_forward.1} parent=1 // pred_region
      _
    $region49: #{autoencoder_forward.1} parent=1 // pred_fallthru
      _
    // Predicated region
    $region50: #{autoencoder_forward.1} parent=1 // pred_check
      _
    $region51: #{autoencoder_forward.1} parent=1 // pred_check_branch
      %103 = sbr.rel (0) target = $region53
    $region52: #{autoencoder_forward.1} parent=1 // pred_region
      %s105 = ssub.s32 2048, 2048
      %106 = vsyncadd [#allocation12], %s105
      %s107 = sshll.u32 [#allocation11], 4
      %s108 = int_to_ptr.vmem [resolvable:$true] %s107
      %113 = dma.hbm_to_vmem [thread:$0]  %s12, 2048, %s108, [#allocation12], 128, 128, 8
    $region53: #{autoencoder_forward.1} parent=1 // pred_fallthru
      _
    // Predicated region
    $region54: #{autoencoder_forward.1} parent=1 // pred_check
      _
    $region55: #{autoencoder_forward.1} parent=1 // pred_check_branch
      %115 = sbr.rel (0) target = $region57
    $region56: #{autoencoder_forward.1} parent=1 // pred_region
      _
    $region57: #{autoencoder_forward.1} parent=1 // pred_fallthru
      _
    // Predicated region
    $region58: #{autoencoder_forward.1} parent=1 // pred_check
      _
    $region59: #{autoencoder_forward.1} parent=1 // pred_check_branch
      %117 = sbr.rel (0) target = $region61
    $region60: #{autoencoder_forward.1} parent=1 // pred_region
      %118 = dma.done [#allocation3], 2048
    $region61: #{autoencoder_forward.1} parent=1 // pred_fallthru
      _
    // Predicated region
    $region62: #{autoencoder_forward.1} parent=1 // pred_check
      _
    $region63: #{autoencoder_forward.1} parent=1 // pred_check_branch
      %120 = sbr.rel (0) target = $region65
    $region64: #{autoencoder_forward.1} parent=1 // pred_region
      %121 = dma.done [#allocation6], 2048
    $region65: #{autoencoder_forward.1} parent=1 // pred_fallthru
      _
    // Predicated region
    $region66: #{autoencoder_forward.1} parent=1 // pred_check
      _
    $region67: #{autoencoder_forward.1} parent=1 // pred_check_branch
      %123 = sbr.rel (0) target = $region69
    $region68: #{autoencoder_forward.1} parent=1 // pred_region
      %124 = dma.done [#allocation6], 4096
    $region69: #{autoencoder_forward.1} parent=1 // pred_fallthru
      _
    // Predicated region
    $region70: #{autoencoder_forward.1} parent=1 // pred_check
      _
    $region71: #{autoencoder_forward.1} parent=1 // pred_check_branch
      %126 = sbr.rel (0) target = $region73
    $region72: #{autoencoder_forward.1} parent=1 // pred_region
      %127 = dma.done [#allocation9], 2048
    $region73: #{autoencoder_forward.1} parent=1 // pred_fallthru
      _
    // Predicated region
    $region74: #{autoencoder_forward.1} parent=1 // pred_check
      _
    $region75: #{autoencoder_forward.1} parent=1 // pred_check_branch
      %129 = sbr.rel (0) target = $region77
    $region76: #{autoencoder_forward.1} parent=1 // pred_region
      %130 = dma.done [#allocation9], 2048
    $region77: #{autoencoder_forward.1} parent=1 // pred_fallthru
      _
    // Predicated region
    $region78: #{autoencoder_forward.1} parent=1 // pred_check
      _
    $region79: #{autoencoder_forward.1} parent=1 // pred_check_branch
      %132 = sbr.rel (0) target = $region81
    $region80: #{autoencoder_forward.1} parent=1 // pred_region
      %133 = dma.done [#allocation12], 2048
    $region81: #{autoencoder_forward.1} parent=1 // pred_fallthru
      _
    %v134 = vld [vmem:[%s0] sm:$0xff]
    %v135 = vld [vmem:[#allocation2] sm:$0xff]
    %v136 = vld [vmem:[#allocation2 + $0x8] sm:$0xff]
    %v137 = vld [vmem:[#allocation2 + $0x10] sm:$0xff]
    %v138 = vld [vmem:[#allocation2 + $0x18] sm:$0xff]
    %v139 = vld [vmem:[#allocation2 + $0x20] sm:$0xff]
    %v140 = vld [vmem:[#allocation2 + $0x28] sm:$0xff]
    %v141 = vld [vmem:[#allocation2 + $0x30] sm:$0xff]
    %v142 = vld [vmem:[#allocation2 + $0x38] sm:$0xff]
    %v143 = vld [vmem:[#allocation2 + $0x40] sm:$0xff]
    %v144 = vld [vmem:[#allocation2 + $0x48] sm:$0xff]
    %v145 = vld [vmem:[#allocation2 + $0x50] sm:$0xff]
    %v146 = vld [vmem:[#allocation2 + $0x58] sm:$0xff]
    %v147 = vld [vmem:[#allocation2 + $0x60] sm:$0xff]
    %v148 = vld [vmem:[#allocation2 + $0x68] sm:$0xff]
    %v149 = vld [vmem:[#allocation2 + $0x70] sm:$0xff]
    %v150 = vld [vmem:[#allocation2 + $0x78] sm:$0xff]
    %v151 = vld [vmem:[%s2] sm:$0x1]
    %v153 = vlaneseq
    %v154 = vshrl.u32 %v153, 7
    %v155 = vsub.s32 0, %v154
    %v156 = vrot.slane %v151, %v155
    %158 = vmatprep.subr.mxu0 0.0
    %159 = vmatpush1.msra.mxu0 %v135
    %160 = vmatprep.subr.mxu0 0.0
    %161 = vmatpush1.msra.mxu0 %v136
    %162 = vmatprep.subr.mxu0 0.0
    %163 = vmatpush1.msra.mxu0 %v137
    %164 = vmatprep.subr.mxu0 0.0
    %165 = vmatpush1.msra.mxu0 %v138
    %166 = vmatprep.subr.mxu0 0.0
    %167 = vmatpush1.msra.mxu0 %v139
    %168 = vmatprep.subr.mxu0 0.0
    %169 = vmatpush1.msra.mxu0 %v140
    %170 = vmatprep.subr.mxu0 0.0
    %171 = vmatpush1.msra.mxu0 %v141
    %172 = vmatprep.subr.mxu0 0.0
    %173 = vmatpush1.msra.mxu0 %v142
    %174 = vmatprep.subr.mxu0 0.0
    %175 = vmatpush1.msra.mxu0 %v143
    %176 = vmatprep.subr.mxu0 0.0
    %177 = vmatpush1.msra.mxu0 %v144
    %178 = vmatprep.subr.mxu0 0.0
    %179 = vmatpush1.msra.mxu0 %v145
    %180 = vmatprep.subr.mxu0 0.0
    %181 = vmatpush1.msra.mxu0 %v146
    %182 = vmatprep.subr.mxu0 0.0
    %183 = vmatpush1.msra.mxu0 %v147
    %184 = vmatprep.subr.mxu0 0.0
    %185 = vmatpush1.msra.mxu0 %v148
    %186 = vmatprep.subr.mxu0 0.0
    %187 = vmatpush1.msra.mxu0 %v149
    %188 = vmatprep.subr.mxu0 0.0
    %189 = vmatpush1.msra.mxu0 %v150
    %190 = vmatprep.subr.mxu0 0.0
    %191 = vmatpush1.msra.mxu0 0.0
    %192 = vmatprep.subr.mxu0 0.0
    %193 = vmatpush1.msra.mxu0 0.0
    %194 = vmatprep.subr.mxu0 0.0
    %195 = vmatpush1.msra.mxu0 0.0
    %196 = vmatprep.subr.mxu0 0.0
    %197 = vmatpush1.msra.mxu0 0.0
    %198 = vmatprep.subr.mxu0 0.0
    %199 = vmatpush1.msra.mxu0 0.0
    %200 = vmatprep.subr.mxu0 0.0
    %201 = vmatpush1.msra.mxu0 0.0
    %202 = vmatprep.subr.mxu0 0.0
    %203 = vmatpush1.msra.mxu0 0.0
    %204 = vmatprep.subr.mxu0 0.0
    %205 = vmatpush1.msra.mxu0 0.0
    %206 = vmatprep.subr.mxu0 0.0
    %207 = vmatpush1.msra.mxu0 0.0
    %208 = vmatprep.subr.mxu0 0.0
    %209 = vmatpush1.msra.mxu0 0.0
    %210 = vmatprep.subr.mxu0 0.0
    %211 = vmatpush1.msra.mxu0 0.0
    %212 = vmatprep.subr.mxu0 0.0
    %213 = vmatpush1.msra.mxu0 0.0
    %214 = vmatprep.subr.mxu0 0.0
    %215 = vmatpush1.msra.mxu0 0.0
    %216 = vmatprep.subr.mxu0 0.0
    %217 = vmatpush1.msra.mxu0 0.0
    %218 = vmatprep.subr.mxu0 0.0
    %219 = vmatpush1.msra.mxu0 0.0
    %220 = vmatprep.subr.mxu0 0.0
    %221 = vmatpush1.msra.mxu0 0.0
    %222 = vmatprep.mubr.f32.mxu0 0.0
    %223 = vmatmul.mubr.f32.gmra.mrb[0].mxu0 %v134
    %v224 = vpop.f32.mrb[0].mxu0
    %v225 = vadd.f32 %v156, %v224
    %v226 = vpop.f32.mrb[0].mxu0
    %227 = vdwg.mxu0
    %v228 = vmax.f32 %v225, 0.0
    %v229 = vld [vmem:[#allocation5] sm:$0xff]
    %v230 = vld [vmem:[#allocation5 + $0x8] sm:$0xff]
    %v231 = vld [vmem:[#allocation5 + $0x10] sm:$0xff]
    %v232 = vld [vmem:[#allocation5 + $0x18] sm:$0xff]
    %v233 = vld [vmem:[#allocation5 + $0x20] sm:$0xff]
    %v234 = vld [vmem:[#allocation5 + $0x28] sm:$0xff]
    %v235 = vld [vmem:[#allocation5 + $0x30] sm:$0xff]
    %v236 = vld [vmem:[#allocation5 + $0x38] sm:$0xff]
    %v237 = vld [vmem:[#allocation5 + $0x40] sm:$0xff]
    %v238 = vld [vmem:[#allocation5 + $0x48] sm:$0xff]
    %v239 = vld [vmem:[#allocation5 + $0x50] sm:$0xff]
    %v240 = vld [vmem:[#allocation5 + $0x58] sm:$0xff]
    %v241 = vld [vmem:[#allocation5 + $0x60] sm:$0xff]
    %v242 = vld [vmem:[#allocation5 + $0x68] sm:$0xff]
    %v243 = vld [vmem:[#allocation5 + $0x70] sm:$0xff]
    %v244 = vld [vmem:[#allocation5 + $0x78] sm:$0xff]
    %v245 = vld [vmem:[%s4] sm:$0x1]
    %v247 = vlaneseq
    %v248 = vshrl.u32 %v247, 7
    %v249 = vsub.s32 0, %v248
    %v250 = vrot.slane %v245, %v249
    %252 = vmatprep.subr.mxu0 0.0
    %253 = vmatpush1.msra.mxu0 %v229
    %254 = vmatprep.subr.mxu0 0.0
    %255 = vmatpush1.msra.mxu0 %v230
    %256 = vmatprep.subr.mxu0 0.0
    %257 = vmatpush1.msra.mxu0 %v231
    %258 = vmatprep.subr.mxu0 0.0
    %259 = vmatpush1.msra.mxu0 %v232
    %260 = vmatprep.subr.mxu0 0.0
    %261 = vmatpush1.msra.mxu0 %v233
    %262 = vmatprep.subr.mxu0 0.0
    %263 = vmatpush1.msra.mxu0 %v234
    %264 = vmatprep.subr.mxu0 0.0
    %265 = vmatpush1.msra.mxu0 %v235
    %266 = vmatprep.subr.mxu0 0.0
    %267 = vmatpush1.msra.mxu0 %v236
    %268 = vmatprep.subr.mxu0 0.0
    %269 = vmatpush1.msra.mxu0 %v237
    %270 = vmatprep.subr.mxu0 0.0
    %271 = vmatpush1.msra.mxu0 %v238
    %272 = vmatprep.subr.mxu0 0.0
    %273 = vmatpush1.msra.mxu0 %v239
    %274 = vmatprep.subr.mxu0 0.0
    %275 = vmatpush1.msra.mxu0 %v240
    %276 = vmatprep.subr.mxu0 0.0
    %277 = vmatpush1.msra.mxu0 %v241
    %278 = vmatprep.subr.mxu0 0.0
    %279 = vmatpush1.msra.mxu0 %v242
    %280 = vmatprep.subr.mxu0 0.0
    %281 = vmatpush1.msra.mxu0 %v243
    %282 = vmatprep.subr.mxu0 0.0
    %283 = vmatpush1.msra.mxu0 %v244
    %284 = vmatprep.subr.mxu0 0.0
    %285 = vmatpush1.msra.mxu0 0.0
    %286 = vmatprep.subr.mxu0 0.0
    %287 = vmatpush1.msra.mxu0 0.0
    %288 = vmatprep.subr.mxu0 0.0
    %289 = vmatpush1.msra.mxu0 0.0
    %290 = vmatprep.subr.mxu0 0.0
    %291 = vmatpush1.msra.mxu0 0.0
    %292 = vmatprep.subr.mxu0 0.0
    %293 = vmatpush1.msra.mxu0 0.0
    %294 = vmatprep.subr.mxu0 0.0
    %295 = vmatpush1.msra.mxu0 0.0
    %296 = vmatprep.subr.mxu0 0.0
    %297 = vmatpush1.msra.mxu0 0.0
    %298 = vmatprep.subr.mxu0 0.0
    %299 = vmatpush1.msra.mxu0 0.0
    %300 = vmatprep.subr.mxu0 0.0
    %301 = vmatpush1.msra.mxu0 0.0
    %302 = vmatprep.subr.mxu0 0.0
    %303 = vmatpush1.msra.mxu0 0.0
    %304 = vmatprep.subr.mxu0 0.0
    %305 = vmatpush1.msra.mxu0 0.0
    %306 = vmatprep.subr.mxu0 0.0
    %307 = vmatpush1.msra.mxu0 0.0
    %308 = vmatprep.subr.mxu0 0.0
    %309 = vmatpush1.msra.mxu0 0.0
    %310 = vmatprep.subr.mxu0 0.0
    %311 = vmatpush1.msra.mxu0 0.0
    %312 = vmatprep.subr.mxu0 0.0
    %313 = vmatpush1.msra.mxu0 0.0
    %314 = vmatprep.subr.mxu0 0.0
    %315 = vmatpush1.msra.mxu0 0.0
    %316 = vmatprep.mubr.f32.mxu0 0.0
    %317 = vmatmul.mubr.f32.gmra.mrb[0].mxu0 %v228
    %v318 = vpop.f32.mrb[0].mxu0
    %v319 = vadd.f32 %v250, %v318
    %v320 = vpop.f32.mrb[0].mxu0
    %321 = vdwg.mxu0
    %v322 = vmax.f32 %v319, 0.0
    %v323 = vld [vmem:[#allocation7] sm:$0xff]
    %v324 = vld [vmem:[#allocation7 + $0x8] sm:$0xff]
    %v325 = vld [vmem:[#allocation7 + $0x10] sm:$0xff]
    %v326 = vld [vmem:[#allocation7 + $0x18] sm:$0xff]
    %v327 = vld [vmem:[#allocation7 + $0x20] sm:$0xff]
    %v328 = vld [vmem:[#allocation7 + $0x28] sm:$0xff]
    %v329 = vld [vmem:[#allocation7 + $0x30] sm:$0xff]
    %v330 = vld [vmem:[#allocation7 + $0x38] sm:$0xff]
    %v331 = vld [vmem:[#allocation7 + $0x40] sm:$0xff]
    %v332 = vld [vmem:[#allocation7 + $0x48] sm:$0xff]
    %v333 = vld [vmem:[#allocation7 + $0x50] sm:$0xff]
    %v334 = vld [vmem:[#allocation7 + $0x58] sm:$0xff]
    %v335 = vld [vmem:[#allocation7 + $0x60] sm:$0xff]
    %v336 = vld [vmem:[#allocation7 + $0x68] sm:$0xff]
    %v337 = vld [vmem:[#allocation7 + $0x70] sm:$0xff]
    %v338 = vld [vmem:[#allocation7 + $0x78] sm:$0xff]
    %v339 = vld [vmem:[#allocation7 + $0x80] sm:$0xff]
    %v340 = vld [vmem:[#allocation7 + $0x88] sm:$0xff]
    %v341 = vld [vmem:[#allocation7 + $0x90] sm:$0xff]
    %v342 = vld [vmem:[#allocation7 + $0x98] sm:$0xff]
    %v343 = vld [vmem:[#allocation7 + $0xa0] sm:$0xff]
    %v344 = vld [vmem:[#allocation7 + $0xa8] sm:$0xff]
    %v345 = vld [vmem:[#allocation7 + $0xb0] sm:$0xff]
    %v346 = vld [vmem:[#allocation7 + $0xb8] sm:$0xff]
    %v347 = vld [vmem:[#allocation7 + $0xc0] sm:$0xff]
    %v348 = vld [vmem:[#allocation7 + $0xc8] sm:$0xff]
    %v349 = vld [vmem:[#allocation7 + $0xd0] sm:$0xff]
    %v350 = vld [vmem:[#allocation7 + $0xd8] sm:$0xff]
    %v351 = vld [vmem:[#allocation7 + $0xe0] sm:$0xff]
    %v352 = vld [vmem:[#allocation7 + $0xe8] sm:$0xff]
    %v353 = vld [vmem:[#allocation7 + $0xf0] sm:$0xff]
    %v354 = vld [vmem:[#allocation7 + $0xf8] sm:$0xff]
    %v355 = vld [vmem:[%s6] sm:$0x3]
    %v356 = vld [vmem:[%s7] sm:$0xff]
    %v358 = vlaneseq
    %v359 = vshrl.u32 %v358, 7
    %v360 = vsub.s32 0, %v359
    %v361 = vrot.slane %v355, %v360
    %v362 = vlaneseq
    %v363 = vshrl.u32 %v362, 7
    %v364 = vsub.s32 1, %v363
    %v365 = vrot.slane %v355, %v364
    %368 = vmatprep.subr.mxu0 %v324
    %369 = vmatpush1.msra.mxu0 %v323
    %370 = vmatprep.subr.mxu0 %v326
    %371 = vmatpush1.msra.mxu0 %v325
    %372 = vmatprep.subr.mxu0 %v328
    %373 = vmatpush1.msra.mxu0 %v327
    %374 = vmatprep.subr.mxu0 %v330
    %375 = vmatpush1.msra.mxu0 %v329
    %376 = vmatprep.subr.mxu0 %v332
    %377 = vmatpush1.msra.mxu0 %v331
    %378 = vmatprep.subr.mxu0 %v334
    %379 = vmatpush1.msra.mxu0 %v333
    %380 = vmatprep.subr.mxu0 %v336
    %381 = vmatpush1.msra.mxu0 %v335
    %382 = vmatprep.subr.mxu0 %v338
    %383 = vmatpush1.msra.mxu0 %v337
    %384 = vmatprep.subr.mxu0 %v340
    %385 = vmatpush1.msra.mxu0 %v339
    %386 = vmatprep.subr.mxu0 %v342
    %387 = vmatpush1.msra.mxu0 %v341
    %388 = vmatprep.subr.mxu0 %v344
    %389 = vmatpush1.msra.mxu0 %v343
    %390 = vmatprep.subr.mxu0 %v346
    %391 = vmatpush1.msra.mxu0 %v345
    %392 = vmatprep.subr.mxu0 %v348
    %393 = vmatpush1.msra.mxu0 %v347
    %394 = vmatprep.subr.mxu0 %v350
    %395 = vmatpush1.msra.mxu0 %v349
    %396 = vmatprep.subr.mxu0 %v352
    %397 = vmatpush1.msra.mxu0 %v351
    %398 = vmatprep.subr.mxu0 %v354
    %399 = vmatpush1.msra.mxu0 %v353
    %400 = vmatprep.subr.mxu0 0.0
    %401 = vmatpush1.msra.mxu0 0.0
    %402 = vmatprep.subr.mxu0 0.0
    %403 = vmatpush1.msra.mxu0 0.0
    %404 = vmatprep.subr.mxu0 0.0
    %405 = vmatpush1.msra.mxu0 0.0
    %406 = vmatprep.subr.mxu0 0.0
    %407 = vmatpush1.msra.mxu0 0.0
    %408 = vmatprep.subr.mxu0 0.0
    %409 = vmatpush1.msra.mxu0 0.0
    %410 = vmatprep.subr.mxu0 0.0
    %411 = vmatpush1.msra.mxu0 0.0
    %412 = vmatprep.subr.mxu0 0.0
    %413 = vmatpush1.msra.mxu0 0.0
    %414 = vmatprep.subr.mxu0 0.0
    %415 = vmatpush1.msra.mxu0 0.0
    %416 = vmatprep.subr.mxu0 0.0
    %417 = vmatpush1.msra.mxu0 0.0
    %418 = vmatprep.subr.mxu0 0.0
    %419 = vmatpush1.msra.mxu0 0.0
    %420 = vmatprep.subr.mxu0 0.0
    %421 = vmatpush1.msra.mxu0 0.0
    %422 = vmatprep.subr.mxu0 0.0
    %423 = vmatpush1.msra.mxu0 0.0
    %424 = vmatprep.subr.mxu0 0.0
    %425 = vmatpush1.msra.mxu0 0.0
    %426 = vmatprep.subr.mxu0 0.0
    %427 = vmatpush1.msra.mxu0 0.0
    %428 = vmatprep.subr.mxu0 0.0
    %429 = vmatpush1.msra.mxu0 0.0
    %430 = vmatprep.subr.mxu0 0.0
    %431 = vmatpush1.msra.mxu0 0.0
    %432 = vmatprep.mubr.f32.mxu0 0.0
    %433 = vmatmul.mubr.f32.gmra.mrb[0].mxu0 %v322
    %v434 = vpop.f32.mrb[0].mxu0
    %v435 = vadd.f32 %v361, %v434
    %v436 = vpop.f32.mrb[0].mxu0
    %v437 = vadd.f32 %v365, %v436
    %438 = vdwg.mxu0
    %v439 = vmul.f32 %v437, 0.5
    %v440 = vmul.f32 %v439, 1.442695
    %v441 = vpow.pop %v440
    %v442 = vmul.f32 %v356, %v441
    %v443 = vadd.f32 %v435, %v442
    %v444 = vld [vmem:[#allocation8] sm:$0xff]
    %v445 = vld [vmem:[#allocation8 + $0x8] sm:$0xff]
    %v446 = vld [vmem:[#allocation8 + $0x10] sm:$0xff]
    %v447 = vld [vmem:[#allocation8 + $0x18] sm:$0xff]
    %v448 = vld [vmem:[#allocation8 + $0x20] sm:$0xff]
    %v449 = vld [vmem:[#allocation8 + $0x28] sm:$0xff]
    %v450 = vld [vmem:[#allocation8 + $0x30] sm:$0xff]
    %v451 = vld [vmem:[#allocation8 + $0x38] sm:$0xff]
    %v452 = vld [vmem:[#allocation8 + $0x40] sm:$0xff]
    %v453 = vld [vmem:[#allocation8 + $0x48] sm:$0xff]
    %v454 = vld [vmem:[#allocation8 + $0x50] sm:$0xff]
    %v455 = vld [vmem:[#allocation8 + $0x58] sm:$0xff]
    %v456 = vld [vmem:[#allocation8 + $0x60] sm:$0xff]
    %v457 = vld [vmem:[#allocation8 + $0x68] sm:$0xff]
    %v458 = vld [vmem:[#allocation8 + $0x70] sm:$0xff]
    %v459 = vld [vmem:[#allocation8 + $0x78] sm:$0xff]
    %v460 = vld [vmem:[%s9] sm:$0x1]
    %v462 = vlaneseq
    %v463 = vshrl.u32 %v462, 7
    %v464 = vsub.s32 0, %v463
    %v465 = vrot.slane %v460, %v464
    %467 = vmatprep.subr.mxu0 0.0
    %468 = vmatpush1.msra.mxu0 %v444
    %469 = vmatprep.subr.mxu0 0.0
    %470 = vmatpush1.msra.mxu0 %v445
    %471 = vmatprep.subr.mxu0 0.0
    %472 = vmatpush1.msra.mxu0 %v446
    %473 = vmatprep.subr.mxu0 0.0
    %474 = vmatpush1.msra.mxu0 %v447
    %475 = vmatprep.subr.mxu0 0.0
    %476 = vmatpush1.msra.mxu0 %v448
    %477 = vmatprep.subr.mxu0 0.0
    %478 = vmatpush1.msra.mxu0 %v449
    %479 = vmatprep.subr.mxu0 0.0
    %480 = vmatpush1.msra.mxu0 %v450
    %481 = vmatprep.subr.mxu0 0.0
    %482 = vmatpush1.msra.mxu0 %v451
    %483 = vmatprep.subr.mxu0 0.0
    %484 = vmatpush1.msra.mxu0 %v452
    %485 = vmatprep.subr.mxu0 0.0
    %486 = vmatpush1.msra.mxu0 %v453
    %487 = vmatprep.subr.mxu0 0.0
    %488 = vmatpush1.msra.mxu0 %v454
    %489 = vmatprep.subr.mxu0 0.0
    %490 = vmatpush1.msra.mxu0 %v455
    %491 = vmatprep.subr.mxu0 0.0
    %492 = vmatpush1.msra.mxu0 %v456
    %493 = vmatprep.subr.mxu0 0.0
    %494 = vmatpush1.msra.mxu0 %v457
    %495 = vmatprep.subr.mxu0 0.0
    %496 = vmatpush1.msra.mxu0 %v458
    %497 = vmatprep.subr.mxu0 0.0
    %498 = vmatpush1.msra.mxu0 %v459
    %499 = vmatprep.subr.mxu0 0.0
    %500 = vmatpush1.msra.mxu0 0.0
    %501 = vmatprep.subr.mxu0 0.0
    %502 = vmatpush1.msra.mxu0 0.0
    %503 = vmatprep.subr.mxu0 0.0
    %504 = vmatpush1.msra.mxu0 0.0
    %505 = vmatprep.subr.mxu0 0.0
    %506 = vmatpush1.msra.mxu0 0.0
    %507 = vmatprep.subr.mxu0 0.0
    %508 = vmatpush1.msra.mxu0 0.0
    %509 = vmatprep.subr.mxu0 0.0
    %510 = vmatpush1.msra.mxu0 0.0
    %511 = vmatprep.subr.mxu0 0.0
    %512 = vmatpush1.msra.mxu0 0.0
    %513 = vmatprep.subr.mxu0 0.0
    %514 = vmatpush1.msra.mxu0 0.0
    %515 = vmatprep.subr.mxu0 0.0
    %516 = vmatpush1.msra.mxu0 0.0
    %517 = vmatprep.subr.mxu0 0.0
    %518 = vmatpush1.msra.mxu0 0.0
    %519 = vmatprep.subr.mxu0 0.0
    %520 = vmatpush1.msra.mxu0 0.0
    %521 = vmatprep.subr.mxu0 0.0
    %522 = vmatpush1.msra.mxu0 0.0
    %523 = vmatprep.subr.mxu0 0.0
    %524 = vmatpush1.msra.mxu0 0.0
    %525 = vmatprep.subr.mxu0 0.0
    %526 = vmatpush1.msra.mxu0 0.0
    %527 = vmatprep.subr.mxu0 0.0
    %528 = vmatpush1.msra.mxu0 0.0
    %529 = vmatprep.subr.mxu0 0.0
    %530 = vmatpush1.msra.mxu0 0.0
    %531 = vmatprep.mubr.f32.mxu0 0.0
    %532 = vmatmul.mubr.f32.gmra.mrb[0].mxu0 %v443
    %v533 = vpop.f32.mrb[0].mxu0
    %v534 = vadd.f32 %v465, %v533
    %v535 = vpop.f32.mrb[0].mxu0
    %536 = vdwg.mxu0
    %v537 = vmax.f32 %v534, 0.0
    %v538 = vld [vmem:[#allocation10] sm:$0xff]
    %v539 = vld [vmem:[#allocation10 + $0x8] sm:$0xff]
    %v540 = vld [vmem:[#allocation10 + $0x10] sm:$0xff]
    %v541 = vld [vmem:[#allocation10 + $0x18] sm:$0xff]
    %v542 = vld [vmem:[#allocation10 + $0x20] sm:$0xff]
    %v543 = vld [vmem:[#allocation10 + $0x28] sm:$0xff]
    %v544 = vld [vmem:[#allocation10 + $0x30] sm:$0xff]
    %v545 = vld [vmem:[#allocation10 + $0x38] sm:$0xff]
    %v546 = vld [vmem:[#allocation10 + $0x40] sm:$0xff]
    %v547 = vld [vmem:[#allocation10 + $0x48] sm:$0xff]
    %v548 = vld [vmem:[#allocation10 + $0x50] sm:$0xff]
    %v549 = vld [vmem:[#allocation10 + $0x58] sm:$0xff]
    %v550 = vld [vmem:[#allocation10 + $0x60] sm:$0xff]
    %v551 = vld [vmem:[#allocation10 + $0x68] sm:$0xff]
    %v552 = vld [vmem:[#allocation10 + $0x70] sm:$0xff]
    %v553 = vld [vmem:[#allocation10 + $0x78] sm:$0xff]
    %v554 = vld [vmem:[%s11] sm:$0x1]
    %v556 = vlaneseq
    %v557 = vshrl.u32 %v556, 7
    %v558 = vsub.s32 0, %v557
    %v559 = vrot.slane %v554, %v558
    %561 = vmatprep.subr.mxu0 0.0
    %562 = vmatpush1.msra.mxu0 %v538
    %563 = vmatprep.subr.mxu0 0.0
    %564 = vmatpush1.msra.mxu0 %v539
    %565 = vmatprep.subr.mxu0 0.0
    %566 = vmatpush1.msra.mxu0 %v540
    %567 = vmatprep.subr.mxu0 0.0
    %568 = vmatpush1.msra.mxu0 %v541
    %569 = vmatprep.subr.mxu0 0.0
    %570 = vmatpush1.msra.mxu0 %v542
    %571 = vmatprep.subr.mxu0 0.0
    %572 = vmatpush1.msra.mxu0 %v543
    %573 = vmatprep.subr.mxu0 0.0
    %574 = vmatpush1.msra.mxu0 %v544
    %575 = vmatprep.subr.mxu0 0.0
    %576 = vmatpush1.msra.mxu0 %v545
    %577 = vmatprep.subr.mxu0 0.0
    %578 = vmatpush1.msra.mxu0 %v546
    %579 = vmatprep.subr.mxu0 0.0
    %580 = vmatpush1.msra.mxu0 %v547
    %581 = vmatprep.subr.mxu0 0.0
    %582 = vmatpush1.msra.mxu0 %v548
    %583 = vmatprep.subr.mxu0 0.0
    %584 = vmatpush1.msra.mxu0 %v549
    %585 = vmatprep.subr.mxu0 0.0
    %586 = vmatpush1.msra.mxu0 %v550
    %587 = vmatprep.subr.mxu0 0.0
    %588 = vmatpush1.msra.mxu0 %v551
    %589 = vmatprep.subr.mxu0 0.0
    %590 = vmatpush1.msra.mxu0 %v552
    %591 = vmatprep.subr.mxu0 0.0
    %592 = vmatpush1.msra.mxu0 %v553
    %593 = vmatprep.subr.mxu0 0.0
    %594 = vmatpush1.msra.mxu0 0.0
    %595 = vmatprep.subr.mxu0 0.0
    %596 = vmatpush1.msra.mxu0 0.0
    %597 = vmatprep.subr.mxu0 0.0
    %598 = vmatpush1.msra.mxu0 0.0
    %599 = vmatprep.subr.mxu0 0.0
    %600 = vmatpush1.msra.mxu0 0.0
    %601 = vmatprep.subr.mxu0 0.0
    %602 = vmatpush1.msra.mxu0 0.0
    %603 = vmatprep.subr.mxu0 0.0
    %604 = vmatpush1.msra.mxu0 0.0
    %605 = vmatprep.subr.mxu0 0.0
    %606 = vmatpush1.msra.mxu0 0.0
    %607 = vmatprep.subr.mxu0 0.0
    %608 = vmatpush1.msra.mxu0 0.0
    %609 = vmatprep.subr.mxu0 0.0
    %610 = vmatpush1.msra.mxu0 0.0
    %611 = vmatprep.subr.mxu0 0.0
    %612 = vmatpush1.msra.mxu0 0.0
    %613 = vmatprep.subr.mxu0 0.0
    %614 = vmatpush1.msra.mxu0 0.0
    %615 = vmatprep.subr.mxu0 0.0
    %616 = vmatpush1.msra.mxu0 0.0
    %617 = vmatprep.subr.mxu0 0.0
    %618 = vmatpush1.msra.mxu0 0.0
    %619 = vmatprep.subr.mxu0 0.0
    %620 = vmatpush1.msra.mxu0 0.0
    %621 = vmatprep.subr.mxu0 0.0
    %622 = vmatpush1.msra.mxu0 0.0
    %623 = vmatprep.subr.mxu0 0.0
    %624 = vmatpush1.msra.mxu0 0.0
    %625 = vmatprep.mubr.f32.mxu0 0.0
    %626 = vmatmul.mubr.f32.gmra.mrb[0].mxu0 %v537
    %v627 = vpop.f32.mrb[0].mxu0
    %v628 = vadd.f32 %v559, %v627
    %v629 = vpop.f32.mrb[0].mxu0
    %630 = vdwg.mxu0
    %v631 = vmax.f32 %v628, 0.0
    %v632 = vld [vmem:[#allocation11] sm:$0xff]
    %v633 = vld [vmem:[#allocation11 + $0x8] sm:$0xff]
    %v634 = vld [vmem:[#allocation11 + $0x10] sm:$0xff]
    %v635 = vld [vmem:[#allocation11 + $0x18] sm:$0xff]
    %v636 = vld [vmem:[#allocation11 + $0x20] sm:$0xff]
    %v637 = vld [vmem:[#allocation11 + $0x28] sm:$0xff]
    %v638 = vld [vmem:[#allocation11 + $0x30] sm:$0xff]
    %v639 = vld [vmem:[#allocation11 + $0x38] sm:$0xff]
    %v640 = vld [vmem:[#allocation11 + $0x40] sm:$0xff]
    %v641 = vld [vmem:[#allocation11 + $0x48] sm:$0xff]
    %v642 = vld [vmem:[#allocation11 + $0x50] sm:$0xff]
    %v643 = vld [vmem:[#allocation11 + $0x58] sm:$0xff]
    %v644 = vld [vmem:[#allocation11 + $0x60] sm:$0xff]
    %v645 = vld [vmem:[#allocation11 + $0x68] sm:$0xff]
    %v646 = vld [vmem:[#allocation11 + $0x70] sm:$0xff]
    %v647 = vld [vmem:[#allocation11 + $0x78] sm:$0xff]
    %v648 = vld [vmem:[%s13] sm:$0x1]
    %v650 = vlaneseq
    %v651 = vshrl.u32 %v650, 7
    %v652 = vsub.s32 0, %v651
    %v653 = vrot.slane %v648, %v652
    %655 = vmatprep.subr.mxu0 0.0
    %656 = vmatpush1.msra.mxu0 %v632
    %657 = vmatprep.subr.mxu0 0.0
    %658 = vmatpush1.msra.mxu0 %v633
    %659 = vmatprep.subr.mxu0 0.0
    %660 = vmatpush1.msra.mxu0 %v634
    %661 = vmatprep.subr.mxu0 0.0
    %662 = vmatpush1.msra.mxu0 %v635
    %663 = vmatprep.subr.mxu0 0.0
    %664 = vmatpush1.msra.mxu0 %v636
    %665 = vmatprep.subr.mxu0 0.0
    %666 = vmatpush1.msra.mxu0 %v637
    %667 = vmatprep.subr.mxu0 0.0
    %668 = vmatpush1.msra.mxu0 %v638
    %669 = vmatprep.subr.mxu0 0.0
    %670 = vmatpush1.msra.mxu0 %v639
    %671 = vmatprep.subr.mxu0 0.0
    %672 = vmatpush1.msra.mxu0 %v640
    %673 = vmatprep.subr.mxu0 0.0
    %674 = vmatpush1.msra.mxu0 %v641
    %675 = vmatprep.subr.mxu0 0.0
    %676 = vmatpush1.msra.mxu0 %v642
    %677 = vmatprep.subr.mxu0 0.0
    %678 = vmatpush1.msra.mxu0 %v643
    %679 = vmatprep.subr.mxu0 0.0
    %680 = vmatpush1.msra.mxu0 %v644
    %681 = vmatprep.subr.mxu0 0.0
    %682 = vmatpush1.msra.mxu0 %v645
    %683 = vmatprep.subr.mxu0 0.0
    %684 = vmatpush1.msra.mxu0 %v646
    %685 = vmatprep.subr.mxu0 0.0
    %686 = vmatpush1.msra.mxu0 %v647
    %687 = vmatprep.subr.mxu0 0.0
    %688 = vmatpush1.msra.mxu0 0.0
    %689 = vmatprep.subr.mxu0 0.0
    %690 = vmatpush1.msra.mxu0 0.0
    %691 = vmatprep.subr.mxu0 0.0
    %692 = vmatpush1.msra.mxu0 0.0
    %693 = vmatprep.subr.mxu0 0.0
    %694 = vmatpush1.msra.mxu0 0.0
    %695 = vmatprep.subr.mxu0 0.0
    %696 = vmatpush1.msra.mxu0 0.0
    %697 = vmatprep.subr.mxu0 0.0
    %698 = vmatpush1.msra.mxu0 0.0
    %699 = vmatprep.subr.mxu0 0.0
    %700 = vmatpush1.msra.mxu0 0.0
    %701 = vmatprep.subr.mxu0 0.0
    %702 = vmatpush1.msra.mxu0 0.0
    %703 = vmatprep.subr.mxu0 0.0
    %704 = vmatpush1.msra.mxu0 0.0
    %705 = vmatprep.subr.mxu0 0.0
    %706 = vmatpush1.msra.mxu0 0.0
    %707 = vmatprep.subr.mxu0 0.0
    %708 = vmatpush1.msra.mxu0 0.0
    %709 = vmatprep.subr.mxu0 0.0
    %710 = vmatpush1.msra.mxu0 0.0
    %711 = vmatprep.subr.mxu0 0.0
    %712 = vmatpush1.msra.mxu0 0.0
    %713 = vmatprep.subr.mxu0 0.0
    %714 = vmatpush1.msra.mxu0 0.0
    %715 = vmatprep.subr.mxu0 0.0
    %716 = vmatpush1.msra.mxu0 0.0
    %717 = vmatprep.subr.mxu0 0.0
    %718 = vmatpush1.msra.mxu0 0.0
    %719 = vmatprep.mubr.f32.mxu0 0.0
    %720 = vmatmul.mubr.f32.gmra.mrb[0].mxu0 %v631
    %v721 = vpop.f32.mrb[0].mxu0
    %v722 = vadd.f32 %v653, %v721
    %v723 = vpop.f32.mrb[0].mxu0
    %724 = vdwg.mxu0
    %725 = vst [vmem:[#allocation13] sm:$0xff] %v722
    %726 = vst [vmem:[#allocation14] sm:$0xff] %v435
    %727 = vst [vmem:[#allocation16] sm:$0xff] %v437
    // Predicated region
    $region82: #{autoencoder_forward.1} parent=1 // pred_check
      _
    $region83: #{autoencoder_forward.1} parent=1 // pred_check_branch
      %729 = sbr.rel (0) target = $region85
    $region84: #{autoencoder_forward.1} parent=1 // pred_region
      %s731 = ssub.s32 128, 128
      %732 = vsyncadd [#allocation4], %s731
      %s734 = sshll.u32 [#allocation13], 4
      %s735 = int_to_ptr.vmem [resolvable:$true] %s734
      %737 = dma.vmem_to_hbm [thread:$0]  %s735, 128, %s14, [#allocation4]
    $region85: #{autoencoder_forward.1} parent=1 // pred_fallthru
      _
    // Predicated region
    $region86: #{autoencoder_forward.1} parent=1 // pred_check
      _
    $region87: #{autoencoder_forward.1} parent=1 // pred_check_branch
      %739 = sbr.rel (0) target = $region89
    $region88: #{autoencoder_forward.1} parent=1 // pred_region
      %s741 = ssub.s32 128, 128
      %742 = vsyncadd [#allocation15], %s741
      %s744 = sshll.u32 [#allocation14], 4
      %s745 = int_to_ptr.vmem [resolvable:$true] %s744
      %747 = dma.vmem_to_hbm [thread:$0]  %s745, 128, %s15, [#allocation15]
    $region89: #{autoencoder_forward.1} parent=1 // pred_fallthru
      _
    // Predicated region
    $region90: #{autoencoder_forward.1} parent=1 // pred_check
      _
    $region91: #{autoencoder_forward.1} parent=1 // pred_check_branch
      %749 = sbr.rel (0) target = $region93
    $region92: #{autoencoder_forward.1} parent=1 // pred_region
      %s751 = ssub.s32 128, 128
      %752 = vsyncadd [#allocation15], %s751
      %s754 = sshll.u32 [#allocation16], 4
      %s755 = int_to_ptr.vmem [resolvable:$true] %s754
      %757 = dma.vmem_to_hbm [thread:$0]  %s755, 128, %s16, [#allocation15]
    $region93: #{autoencoder_forward.1} parent=1 // pred_fallthru
      _
    // Predicated region
    $region94: #{autoencoder_forward.1} parent=1 // pred_check
      _
    $region95: #{autoencoder_forward.1} parent=1 // pred_check_branch
      %759 = sbr.rel (0) target = $region97
    $region96: #{autoencoder_forward.1} parent=1 // pred_region
      %760 = dma.done [#allocation4], 128
    $region97: #{autoencoder_forward.1} parent=1 // pred_fallthru
      _
    // Predicated region
    $region98: #{autoencoder_forward.1} parent=1 // pred_check
      _
    $region99: #{autoencoder_forward.1} parent=1 // pred_check_branch
      %762 = sbr.rel (0) target = $region101
    $region100: #{autoencoder_forward.1} parent=1 // pred_region
      %763 = dma.done [#allocation15], 128
    $region101: #{autoencoder_forward.1} parent=1 // pred_fallthru
      _
    // Predicated region
    $region102: #{autoencoder_forward.1} parent=1 // pred_check
      _
    $region103: #{autoencoder_forward.1} parent=1 // pred_check_branch
      %765 = sbr.rel (0) target = $region105
    $region104: #{autoencoder_forward.1} parent=1 // pred_region
      %766 = dma.done [#allocation15], 128
    $region105: #{autoencoder_forward.1} parent=1 // pred_fallthru
      _
    %767 = vsyncpa [#allocation3], 1
    %768 = vsyncpa [#allocation6], 1
    %769 = vsyncpa [#allocation9], 1
    %770 = vsyncpa [#allocation12], 1
    %771 = vsyncpa [#allocation4], 1
    %772 = vsyncpa [#allocation15], 1

</llo_original>
